<compile_context>
chip_gen: v6e
topology: v6e:2x2x1
jax: 0.10.0
libtpu: 0.0.40
codegen_flags: <defaults>
</compile_context>

<pallas_src>
import jax
import jax.numpy as jnp
from jax.experimental import pallas as pl
from jax.experimental.pallas import tpu as pltpu


def linear_clamp_kernel(x_ref, w_ref, b_ref, o_ref):
    # x_ref: (B, F) VMEM, w_ref: (1, F) VMEM (lane-dense), b_ref: (1,) SMEM scalar.
    # Linear via VPU elementwise multiply + XLU lane reduction (no MXU for N=1).
    a1 = jnp.sum(x_ref[...] * w_ref[...], axis=-1, keepdims=True) + (b_ref[0] + 3.0)
    # clamp_max(., 5) then clamp_min(., 0)  ==  clip to [0, 5]
    o_ref[...] = jnp.clip(a1, 0.0, 5.0).astype(o_ref.dtype)


def _model_forward(x, weight, bias):
    """x: (B, 128) f32, weight: (1, 128) f32 (PyTorch layout), bias: (1,) f32."""
    B, _ = x.shape
    O = weight.shape[0]
    return pl.pallas_call(
        linear_clamp_kernel,
        out_shape=jax.ShapeDtypeStruct((B, O), x.dtype),
        in_specs=[
            pl.BlockSpec(memory_space=pltpu.MemorySpace.VMEM),   # x, full array
            pl.BlockSpec(memory_space=pltpu.MemorySpace.VMEM),   # weight, full array
            pl.BlockSpec(memory_space=pltpu.MemorySpace.SMEM),   # raw bias scalar
        ],
        out_specs=pl.BlockSpec(memory_space=pltpu.MemorySpace.VMEM),
    )(x, weight, bias)


# Single dispatch per call: pallas_call + nothing else (no wrapper-side bias fold).
model_forward = jax.jit(_model_forward)


if __name__ == "__main__":
    key = jax.random.PRNGKey(0)
    kx, kw, kb = jax.random.split(key, 3)

    # Input consistent with the torch module: x1 = torch.randn(2, 128)
    x = jax.random.normal(kx, (2, 128), dtype=jnp.float32)

    # Deterministic Linear(128, 1) parameters (torch's default uniform init range).
    bound = 1.0 / jnp.sqrt(128.0)
    weight = jax.random.uniform(kw, (1, 128), minval=-bound, maxval=bound, dtype=jnp.float32)
    bias = jax.random.uniform(kb, (1,), minval=-bound, maxval=bound, dtype=jnp.float32)

    # Keep params device-resident.
    weight = jax.device_put(weight)
    bias = jax.device_put(bias)

    out = model_forward(x, weight, bias)
    out = jax.block_until_ready(out)

    # Reference check in plain JAX (same semantics as the torch module's return value a4).
    ref = jnp.maximum(jnp.minimum(x @ weight.T + bias + 3.0, 5.0), 0.0)
    assert out.shape == (2, 1)
    assert jnp.allclose(out, ref, atol=1e-5, rtol=1e-5)

    print("KERNEL_OK")
</pallas_src>

<mosaic_0001>
module attributes {stable_mosaic.version = 11 : i64} {
  func.func @linear_clamp_kernel(%arg0: memref<2x128xf32, #tpu.memory_space<vmem>>, %arg1: memref<1x128xf32, #tpu.memory_space<vmem>>, %arg2: memref<1xf32, #tpu.memory_space<smem>>, %arg3: memref<2x1xf32, #tpu.memory_space<vmem>>) attributes {dimension_semantics = [], scalar_prefetch = 0 : i64, scratch_operands = 0 : i64, tpu.core_type = #tpu.core_type<tc>} {
    %c0 = arith.constant 0 : index
    %c0_0 = arith.constant 0 : index
    %0 = vector.load %arg0[%c0, %c0_0] : memref<2x128xf32, #tpu.memory_space<vmem>>, vector<2x128xf32>
    %c0_1 = arith.constant 0 : index
    %c0_2 = arith.constant 0 : index
    %1 = vector.load %arg1[%c0_1, %c0_2] : memref<1x128xf32, #tpu.memory_space<vmem>>, vector<1x128xf32>
    %2 = vector.broadcast %1 : vector<1x128xf32> to vector<2x128xf32>
    %3 = arith.mulf %0, %2 : vector<2x128xf32>
    %cst = arith.constant dense<0.000000e+00> : vector<2xf32>
    %4 = vector.multi_reduction <add>, %3, %cst [1] : vector<2x128xf32> to vector<2xf32>
    %5 = vector.shape_cast %4 : vector<2xf32> to vector<2x1xf32>
    %c0_3 = arith.constant 0 : index
    %6 = memref.load %arg2[%c0_3] : memref<1xf32, #tpu.memory_space<smem>>
    %cst_4 = arith.constant 3.000000e+00 : f32
    %7 = arith.addf %6, %cst_4 : f32
    %8 = vector.broadcast %7 : f32 to vector<2x1xf32>
    %9 = arith.addf %5, %8 : vector<2x1xf32>
    %cst_5 = arith.constant 0.000000e+00 : f32
    %cst_6 = arith.constant 5.000000e+00 : f32
    %10 = vector.broadcast %cst_5 : f32 to vector<2x1xf32>
    %11 = arith.maximumf %10, %9 : vector<2x1xf32>
    %12 = vector.broadcast %cst_6 : f32 to vector<2x1xf32>
    %13 = arith.minimumf %12, %11 : vector<2x1xf32>
    %c0_7 = arith.constant 0 : index
    %c0_8 = arith.constant 0 : index
    %14 = vector.load %arg3[%c0_7, %c0_8] : memref<2x1xf32, #tpu.memory_space<vmem>>, vector<2x1xf32>
    tpu.vector_store %arg3[%c0_7, %c0_8], %13 {strides = array<i32>} : memref<2x1xf32, #tpu.memory_space<vmem>>, vector<2x1xf32>,
    return
  }
}

</mosaic_0001>

<llo_original>
// kernel: _model_forward.1
$region0: #{_model_forward.1}
  #allocation0 [shape = 'u32[]', space=smem, size = 0x4, offset = 0x4, fixed_abs, tag = 'smem constant byte address 0x4 - core index']
  #allocation1 [shape = 'u32[144,128]{1,0:T(1,128)}', space=vmem, size = 0x12000, scoped, tag = 'internal scratch']
  #allocation2 [shape = 'f32[1]{0:T(128)S(6)}', space=smem, size = 0x200, scoped, tag = 'scoped memory for _model_forward.1']
  %s0 = inlined_call_operand.vmem [shape: f32[2,128], index: 0, kind: input, shape index: {}]
  %s1 = inlined_call_operand.vmem [shape: f32[1,128], index: 1, kind: input, shape index: {}]
  %s2 = inlined_call_operand.<no memory space> [shape: f32[1], index: 2, kind: input, shape index: {}]
  %s3 = inlined_call_operand.vmem [shape: f32[2,1], index: 3, kind: output, shape index: {}]
  %s4 = sld [smem:[#allocation0]]
  $region22: #{_model_forward.1} parent=0
    _
  %s6 = ssub.s32 1, %s4
  %s7 = scalar_select 0, %s6, %s4
  %8 = sst [smem:[#allocation2]] %s2
  // Predicated region
  $region2: #{_model_forward.1} parent=0 // pred_check
    _
  $region3: #{_model_forward.1} parent=0 // pred_check_branch
    %10 = sbr.rel (0) target = $region5
  $region4: #{_model_forward.1} parent=0 // pred_region
    _
  $region5: #{_model_forward.1} parent=0 // pred_fallthru
    _
  // Predicated region
  $region6: #{_model_forward.1} parent=0 // pred_check
    _
  $region7: #{_model_forward.1} parent=0 // pred_check_branch
    %12 = sbr.rel (0) target = $region9
  $region8: #{_model_forward.1} parent=0 // pred_region
    _
  $region9: #{_model_forward.1} parent=0 // pred_fallthru
    _
  // Predicated region
  $region10: #{_model_forward.1} parent=0 // pred_check
    _
  $region11: #{_model_forward.1} parent=0 // pred_check_branch
    %14 = sbr.rel (0) target = $region13
  $region12: #{_model_forward.1} parent=0 // pred_region
    _
  $region13: #{_model_forward.1} parent=0 // pred_fallthru
    _
  %v15 = vld [vmem:[%s0] sm:$0x3]
  %v16 = vld [vmem:[%s1] sm:$0x1]
  %v18 = vlaneseq
  %v19 = vshrl.u32 %v18, 7
  %v20 = vsub.s32 0, %v19
  %v21 = vrot.slane %v16, %v20
  %v23 = vmul.f32 %v15, %v21
  %vm24 = vcmask 1041408
  %v25 = vsel %vm24, %v23, 0.0
  %26 = vadd.xlane.f32.xlu0 %v25
  %v27 = vpop.xlane.xlu0 %26
  %s28 = sld [smem:[#allocation2]]
  %s29 = sadd.f32 %s28, 3.0
  %v30 = vstv %s29
  %v31 = vadd.f32 %v27, %v30
  %v32 = vmax.f32 %v31, 0.0
  %v33 = vmin.f32 %v32, 5.0
  %vm34 = vcmask 1024
  %35 = vst.msk [vmem:[%s3] sm:$0x3] %vm34, %v33
  // Predicated region
  $region14: #{_model_forward.1} parent=0 // pred_check
    _
  $region15: #{_model_forward.1} parent=0 // pred_check_branch
    %37 = sbr.rel (0) target = $region17
  $region16: #{_model_forward.1} parent=0 // pred_region
    _
  $region17: #{_model_forward.1} parent=0 // pred_fallthru
    _
  // Predicated region
  $region18: #{_model_forward.1} parent=0 // pred_check
    _
  $region19: #{_model_forward.1} parent=0 // pred_check_branch
    %39 = sbr.rel (0) target = $region21
  $region20: #{_model_forward.1} parent=0 // pred_region
    _
  $region21: #{_model_forward.1} parent=0 // pred_fallthru
    _

</llo_original>
